<compile_context>
chip_gen: v7x
topology: tpu7x:2x2x1
jax: 0.10.0
libtpu: 0.0.40
codegen_flags: <defaults>
</compile_context>

<pallas_src>
import jax
import jax.numpy as jnp
from jax import lax
from jax.experimental import pallas as pl
from jax.experimental.pallas import tpu as pltpu


def encoder_gru_kernel(tok_ref, emb_ref, h0_ref, w_ih_ref, b_ih_ref,
                       w_hh_ref, b_hh_ref, out_ref, x_sc, gi_sc):
    """Embedding gather + hoisted input projection + GRU recurrence in one call.

    tok_ref  : (T,)    int32 token ids (SMEM, scalar prefetch)
    emb_ref  : (V, H)  embedding table (VMEM resident, full block)
    h0_ref   : (1, H)  initial hidden state
    w_ih_ref : (H, 3H) W_ih^T, columns ordered [r | z | n]
    b_ih_ref : (1, 3H)
    w_hh_ref : (H, 3H) W_hh^T, columns ordered [r | z | n]
    b_hh_ref : (1, 3H)
    out_ref  : (T, H)  out[t] = hidden state after step t (dense slab writeback)
    x_sc     : (T, H)  VMEM scratch: gathered embeddings
    gi_sc    : (T, 3H) VMEM scratch: input-side gate pre-activations
    """
    T, H = out_ref.shape

    # 1) Gather embedding rows inside VMEM (no per-step HBM DMA). T is small
    #    and static, so this unrolls at trace time.
    for t in range(T):
        x_sc[pl.ds(t, 1), :] = emb_ref[pl.ds(tok_ref[t], 1), :]

    # 2) Hoisted input projection: ONE lane-dense (T,H)@(H,3H) MXU matmul.
    gi_sc[...] = (
        jnp.dot(x_sc[...], w_ih_ref[...], preferred_element_type=jnp.float32)
        + b_ih_ref[...]
    )

    w_hh = w_hh_ref[...]        # hoisted loads: stay in vregs across the loop
    b_hh = b_hh_ref[...]

    # 3) Sequential recurrence, entirely in VMEM / vregs.
    def step(t, h):
        gi_t = gi_sc[pl.ds(t, 1), :]                                   # (1, 3H)
        gh = jnp.dot(h, w_hh, preferred_element_type=jnp.float32) + b_hh
        rz = jax.nn.sigmoid(gi_t[:, :2 * H] + gh[:, :2 * H])           # fused r/z
        r = rz[:, :H]
        z = rz[:, H:]
        n = jnp.tanh(gi_t[:, 2 * H:] + r * gh[:, 2 * H:])
        h_new = (1.0 - z) * n + z * h
        out_ref[pl.ds(t, 1), :] = h_new.astype(out_ref.dtype)
        return h_new

    lax.fori_loop(0, T, step, h0_ref[...].astype(jnp.float32), unroll=True)


def gru_encode_pallas(tokens, h0, embedding, w_ih_t, b_ih, w_hh_t, b_hh):
    """Run the embedding + GRU over a whole token sequence in one pallas_call.

    tokens    : (T,) int32
    h0        : (1, H)  f32
    embedding : (V, H)  f32
    w_ih_t    : (H, 3H) f32
    b_ih      : (1, 3H) f32
    w_hh_t    : (H, 3H) f32
    b_hh      : (1, 3H) f32
    Returns out: (T, H) f32 where out[t] is the hidden state after step t.
    """
    T = int(tokens.shape[0])
    V, H = embedding.shape

    grid_spec = pltpu.PrefetchScalarGridSpec(
        num_scalar_prefetch=1,
        grid=(1,),                      # single invocation; time loop is in-kernel
        in_specs=[
            pl.BlockSpec((V, H), lambda i, tok: (0, 0)),        # full emb table
            pl.BlockSpec((1, H), lambda i, tok: (0, 0)),        # h0
            pl.BlockSpec((H, 3 * H), lambda i, tok: (0, 0)),    # W_ih^T
            pl.BlockSpec((1, 3 * H), lambda i, tok: (0, 0)),    # b_ih
            pl.BlockSpec((H, 3 * H), lambda i, tok: (0, 0)),    # W_hh^T
            pl.BlockSpec((1, 3 * H), lambda i, tok: (0, 0)),    # b_hh
        ],
        out_specs=pl.BlockSpec((T, H), lambda i, tok: (0, 0)),  # dense slab
        scratch_shapes=[
            pltpu.VMEM((T, H), jnp.float32),       # gathered embeddings
            pltpu.VMEM((T, 3 * H), jnp.float32),   # input-side gate pre-acts
        ],
    )

    return pl.pallas_call(
        encoder_gru_kernel,
        out_shape=jax.ShapeDtypeStruct((T, H), jnp.float32),
        grid_spec=grid_spec,
        compiler_params=pltpu.CompilerParams(
            dimension_semantics=("arbitrary",)),
    )(tokens, embedding, h0, w_ih_t, b_ih, w_hh_t, b_hh)


class EncoderRNNPallas:
    """JAX/Pallas port of the PyTorch EncoderRNN (embedding + 1-layer GRU)."""

    def __init__(self, input_size, hidden_size, key):
        self.hidden_size = hidden_size
        H = hidden_size
        k_emb, k_wih, k_whh, k_bih, k_bhh = jax.random.split(key, 5)
        bound = 1.0 / jnp.sqrt(H)

        # nn.Embedding(input_size, H): weight (V, H), N(0, 1) init.
        self.embedding = jax.random.normal(k_emb, (input_size, H), jnp.float32)
        # nn.GRU(H, H): weight_ih_l0 (3H, H), weight_hh_l0 (3H, H), biases (3H,)
        self.w_ih = jax.random.uniform(k_wih, (3 * H, H), jnp.float32, -bound, bound)
        self.w_hh = jax.random.uniform(k_whh, (3 * H, H), jnp.float32, -bound, bound)
        self.b_ih = jax.random.uniform(k_bih, (3 * H,), jnp.float32, -bound, bound)
        self.b_hh = jax.random.uniform(k_bhh, (3 * H,), jnp.float32, -bound, bound)

        # Kernel layout: pre-transposed weights so x @ w_ih_t / h @ w_hh_t give
        # gate columns in PyTorch order [r | z | n]; biases as (1, 3H) rows.
        self.w_ih_t = jnp.transpose(self.w_ih)          # (H, 3H)
        self.w_hh_t = jnp.transpose(self.w_hh)          # (H, 3H)
        self.b_ih_2d = self.b_ih.reshape(1, 3 * H)
        self.b_hh_2d = self.b_hh.reshape(1, 3 * H)

    def init_hidden(self):
        return jnp.zeros((1, 1, self.hidden_size), jnp.float32)

    def __call__(self, inp, hidden):
        """Single-step forward, matching the PyTorch module's forward().

        NOTE: for multi-token encoding prefer encode_sequence(); calling this
        per token pays a pallas_call launch + HBM round-trip of h each step.
        """
        tokens = jnp.asarray(inp, jnp.int32).reshape(1)
        h0 = hidden.reshape(1, self.hidden_size).astype(jnp.float32)
        out = gru_encode_pallas(tokens, h0, self.embedding, self.w_ih_t,
                                self.b_ih_2d, self.w_hh_t, self.b_hh_2d)
        h_new = out[-1].reshape(1, 1, -1)
        return h_new, h_new  # seq_len == 1: output == new hidden

    def encode_sequence(self, tokens, hidden):
        """Fused multi-step encoding: one pallas_call for the whole sequence."""
        tokens = jnp.asarray(tokens, jnp.int32).reshape(-1)
        h0 = hidden.reshape(1, self.hidden_size).astype(jnp.float32)
        out = gru_encode_pallas(tokens, h0, self.embedding, self.w_ih_t,
                                self.b_ih_2d, self.w_hh_t, self.b_hh_2d)
        T = tokens.shape[0]
        return out.reshape(T, 1, self.hidden_size), out[-1].reshape(1, 1, -1)

    # ---- pure-JAX reference using the original PyTorch-layout weights ------
    def _reference_step(self, x, h):
        H = self.hidden_size
        gi = x @ self.w_ih.T + self.b_ih[None, :]   # (1, 3H)
        gh = h @ self.w_hh.T + self.b_hh[None, :]   # (1, 3H)
        i_r, i_z, i_n = gi[:, :H], gi[:, H:2 * H], gi[:, 2 * H:]
        h_r, h_z, h_n = gh[:, :H], gh[:, H:2 * H], gh[:, 2 * H:]
        r = jax.nn.sigmoid(i_r + h_r)
        z = jax.nn.sigmoid(i_z + h_z)
        n = jnp.tanh(i_n + r * h_n)
        return (1.0 - z) * n + z * h

    def reference_sequence(self, tokens, hidden):
        H = self.hidden_size
        tokens = jnp.asarray(tokens, jnp.int32).reshape(-1)
        h = hidden.reshape(1, H)
        outs = []
        for t in range(tokens.shape[0]):
            x = self.embedding[tokens[t]].reshape(1, H)
            h = self._reference_step(x, h)
            outs.append(h)
        return jnp.stack(outs, 0).reshape(-1, 1, H), h.reshape(1, 1, H)


if __name__ == "__main__":
    key = jax.random.PRNGKey(0)
    k_model, k_tok, k_hid = jax.random.split(key, 3)

    INPUT_SIZE = 16   # vocab size
    HIDDEN = 32       # hidden size
    SEQ = 8           # sequence length for the fused-loop path

    enc = EncoderRNNPallas(INPUT_SIZE, HIDDEN, k_model)

    tokens = jax.random.randint(k_tok, (SEQ,), 0, INPUT_SIZE, dtype=jnp.int32)
    hidden = 0.1 * jax.random.normal(k_hid, (1, 1, HIDDEN), jnp.float32)

    # --- single-step forward (matches the PyTorch module's forward) ---------
    out1, hid1 = enc(tokens[0], hidden)
    out1 = jax.block_until_ready(out1)
    hid1 = jax.block_until_ready(hid1)
    ref_out1, ref_hid1 = enc.reference_sequence(tokens[:1], hidden)
    assert out1.shape == (1, 1, HIDDEN) and hid1.shape == (1, 1, HIDDEN)
    assert jnp.allclose(out1, ref_out1[-1:].reshape(1, 1, -1), atol=1e-5, rtol=1e-5)
    assert jnp.allclose(hid1, ref_hid1, atol=1e-5, rtol=1e-5)

    # --- fused whole-sequence encoding (single pallas_call, in-kernel loop) --
    outs, hid = enc.encode_sequence(tokens, hidden)
    outs = jax.block_until_ready(outs)
    hid = jax.block_until_ready(hid)
    ref_outs, ref_hid = enc.reference_sequence(tokens, hidden)
    assert outs.shape == (SEQ, 1, HIDDEN) and hid.shape == (1, 1, HIDDEN)
    assert jnp.allclose(outs, ref_outs, atol=1e-5, rtol=1e-5)
    assert jnp.allclose(hid, ref_hid, atol=1e-5, rtol=1e-5)

    print("KERNEL_OK")
</pallas_src>

<mosaic_0001>
module attributes {stable_mosaic.version = 11 : i64} {
  func.func @encoder_gru_kernel(%arg0: i32, %arg1: memref<1xi32, #tpu.memory_space<smem>>, %arg2: memref<16x32xf32, #tpu.memory_space<vmem>>, %arg3: memref<1x32xf32, #tpu.memory_space<vmem>>, %arg4: memref<32x96xf32, #tpu.memory_space<vmem>>, %arg5: memref<1x96xf32, #tpu.memory_space<vmem>>, %arg6: memref<32x96xf32, #tpu.memory_space<vmem>>, %arg7: memref<1x96xf32, #tpu.memory_space<vmem>>, %arg8: memref<1x32xf32, #tpu.memory_space<vmem>>, %arg9: memref<1x32xf32, #tpu.memory_space<vmem>>, %arg10: memref<1x96xf32, #tpu.memory_space<vmem>>) attributes {dimension_semantics = [#tpu.dimension_semantics<arbitrary>], iteration_bounds = array<i64: 1>, scalar_prefetch = 1 : i64, scratch_operands = 2 : i64, tpu.core_type = #tpu.core_type<tc>, window_params = [{pipeline_mode = #tpu.pipeline_mode<synchronous>, transform_indices = @transform_0, window_bounds = array<i64: 16, 32>}, {pipeline_mode = #tpu.pipeline_mode<synchronous>, transform_indices = @transform_1, window_bounds = array<i64: 1, 32>}, {pipeline_mode = #tpu.pipeline_mode<synchronous>, transform_indices = @transform_2, window_bounds = array<i64: 32, 96>}, {pipeline_mode = #tpu.pipeline_mode<synchronous>, transform_indices = @transform_3, window_bounds = array<i64: 1, 96>}, {pipeline_mode = #tpu.pipeline_mode<synchronous>, transform_indices = @transform_4, window_bounds = array<i64: 32, 96>}, {pipeline_mode = #tpu.pipeline_mode<synchronous>, transform_indices = @transform_5, window_bounds = array<i64: 1, 96>}, {pipeline_mode = #tpu.pipeline_mode<synchronous>, transform_indices = @transform_6, window_bounds = array<i64: 1, 32>}]} {
    %c0 = arith.constant 0 : index
    %0 = memref.load %arg1[%c0] : memref<1xi32, #tpu.memory_space<smem>>
    %1 = arith.index_cast %0 : i32 to index
    %c0_0 = arith.constant 0 : index
    %2 = vector.load %arg2[%1, %c0_0] : memref<16x32xf32, #tpu.memory_space<vmem>>, vector<1x32xf32>
    %c0_1 = arith.constant 0 : index
    %c0_2 = arith.constant 0 : index
    %3 = vector.load %arg9[%c0_1, %c0_2] : memref<1x32xf32, #tpu.memory_space<vmem>>, vector<1x32xf32>
    tpu.vector_store %arg9[%c0_1, %c0_2], %2 {strides = array<i32>} : memref<1x32xf32, #tpu.memory_space<vmem>>, vector<1x32xf32>,
    %c0_3 = arith.constant 0 : index
    %c0_4 = arith.constant 0 : index
    %4 = vector.load %arg9[%c0_3, %c0_4] : memref<1x32xf32, #tpu.memory_space<vmem>>, vector<1x32xf32>
    %c0_5 = arith.constant 0 : index
    %c0_6 = arith.constant 0 : index
    %5 = vector.load %arg4[%c0_5, %c0_6] : memref<32x96xf32, #tpu.memory_space<vmem>>, vector<32x96xf32>
    %cst = arith.constant dense<0.000000e+00> : vector<1x96xf32>
    %6 = tpu.matmul %4, %5, %cst {dimension_numbers = #tpu.dot_dimension_numbers<[1], [0], [0], [1], [0, 0, 1, 1], [], []>} : vector<1x32xf32>, vector<32x96xf32>, vector<1x96xf32> -> vector<1x96xf32>
    %c0_7 = arith.constant 0 : index
    %c0_8 = arith.constant 0 : index
    %7 = vector.load %arg5[%c0_7, %c0_8] : memref<1x96xf32, #tpu.memory_space<vmem>>, vector<1x96xf32>
    %8 = arith.addf %6, %7 : vector<1x96xf32>
    %c0_9 = arith.constant 0 : index
    %c0_10 = arith.constant 0 : index
    %9 = vector.load %arg10[%c0_9, %c0_10] : memref<1x96xf32, #tpu.memory_space<vmem>>, vector<1x96xf32>
    tpu.vector_store %arg10[%c0_9, %c0_10], %8 {strides = array<i32>} : memref<1x96xf32, #tpu.memory_space<vmem>>, vector<1x96xf32>,
    %c0_11 = arith.constant 0 : index
    %c0_12 = arith.constant 0 : index
    %10 = vector.load %arg6[%c0_11, %c0_12] : memref<32x96xf32, #tpu.memory_space<vmem>>, vector<32x96xf32>
    %c0_13 = arith.constant 0 : index
    %c0_14 = arith.constant 0 : index
    %11 = vector.load %arg7[%c0_13, %c0_14] : memref<1x96xf32, #tpu.memory_space<vmem>>, vector<1x96xf32>
    %c0_15 = arith.constant 0 : index
    %c0_16 = arith.constant 0 : index
    %12 = vector.load %arg3[%c0_15, %c0_16] : memref<1x32xf32, #tpu.memory_space<vmem>>, vector<1x32xf32>
    %c0_i32 = arith.constant 0 : i32
    %13 = arith.index_cast %c0_i32 : i32 to index
    %c0_17 = arith.constant 0 : index
    %14 = vector.load %arg10[%13, %c0_17] : memref<1x96xf32, #tpu.memory_space<vmem>>, vector<1x96xf32>
    %cst_18 = arith.constant dense<0.000000e+00> : vector<1x96xf32>
    %15 = tpu.matmul %12, %10, %cst_18 {dimension_numbers = #tpu.dot_dimension_numbers<[1], [0], [0], [1], [0, 0, 1, 1], [], []>} : vector<1x32xf32>, vector<32x96xf32>, vector<1x96xf32> -> vector<1x96xf32>
    %16 = arith.addf %15, %11 : vector<1x96xf32>
    %17 = vector.extract_strided_slice %14 {offsets = [0, 0], sizes = [1, 64], strides = [1, 1]} : vector<1x96xf32> to vector<1x64xf32>
    %18 = vector.extract_strided_slice %16 {offsets = [0, 0], sizes = [1, 64], strides = [1, 1]} : vector<1x96xf32> to vector<1x64xf32>
    %19 = arith.addf %17, %18 : vector<1x64xf32>
    %20 = arith.negf %19 : vector<1x64xf32>
    %21 = math.exp %20 : vector<1x64xf32>
    %cst_19 = arith.constant 1.000000e+00 : f32
    %22 = vector.broadcast %cst_19 : f32 to vector<1x64xf32>
    %23 = arith.addf %22, %21 : vector<1x64xf32>
    %24 = arith.divf %22, %23 : vector<1x64xf32>
    %25 = vector.extract_strided_slice %24 {offsets = [0, 0], sizes = [1, 32], strides = [1, 1]} : vector<1x64xf32> to vector<1x32xf32>
    %26 = vector.extract_strided_slice %24 {offsets = [0, 32], sizes = [1, 32], strides = [1, 1]} : vector<1x64xf32> to vector<1x32xf32>
    %27 = vector.extract_strided_slice %14 {offsets = [0, 64], sizes = [1, 32], strides = [1, 1]} : vector<1x96xf32> to vector<1x32xf32>
    %28 = vector.extract_strided_slice %16 {offsets = [0, 64], sizes = [1, 32], strides = [1, 1]} : vector<1x96xf32> to vector<1x32xf32>
    %29 = arith.mulf %25, %28 : vector<1x32xf32>
    %30 = arith.addf %27, %29 : vector<1x32xf32>
    %31 = math.tanh %30 : vector<1x32xf32>
    %cst_20 = arith.constant 1.000000e+00 : f32
    %32 = vector.broadcast %cst_20 : f32 to vector<1x32xf32>
    %33 = arith.subf %32, %26 : vector<1x32xf32>
    %34 = arith.mulf %33, %31 : vector<1x32xf32>
    %35 = arith.mulf %26, %12 : vector<1x32xf32>
    %36 = arith.addf %34, %35 : vector<1x32xf32>
    %37 = arith.index_cast %c0_i32 : i32 to index
    %c0_21 = arith.constant 0 : index
    %38 = vector.load %arg8[%37, %c0_21] : memref<1x32xf32, #tpu.memory_space<vmem>>, vector<1x32xf32>
    tpu.vector_store %arg8[%37, %c0_21], %36 {strides = array<i32>} : memref<1x32xf32, #tpu.memory_space<vmem>>, vector<1x32xf32>,
    %c1_i32 = arith.constant 1 : i32
    return
  }
  func.func @transform_0(%arg0: i32, %arg1: memref<1xi32, #tpu.memory_space<smem>>) -> (i32, i32) {
    %c0_i32 = arith.constant 0 : i32
    %c0_i32_0 = arith.constant 0 : i32
    %c0_i32_1 = arith.constant 0 : i32
    return %c0_i32, %c0_i32_0 : i32, i32
  }
  func.func @transform_1(%arg0: i32, %arg1: memref<1xi32, #tpu.memory_space<smem>>) -> (i32, i32) {
    %c0_i32 = arith.constant 0 : i32
    %c0_i32_0 = arith.constant 0 : i32
    %c0_i32_1 = arith.constant 0 : i32
    return %c0_i32, %c0_i32_0 : i32, i32
  }
  func.func @transform_2(%arg0: i32, %arg1: memref<1xi32, #tpu.memory_space<smem>>) -> (i32, i32) {
    %c0_i32 = arith.constant 0 : i32
    %c0_i32_0 = arith.constant 0 : i32
    %c0_i32_1 = arith.constant 0 : i32
    return %c0_i32, %c0_i32_0 : i32, i32
  }
  func.func @transform_3(%arg0: i32, %arg1: memref<1xi32, #tpu.memory_space<smem>>) -> (i32, i32) {
    %c0_i32 = arith.constant 0 : i32
    %c0_i32_0 = arith.constant 0 : i32
    %c0_i32_1 = arith.constant 0 : i32
    return %c0_i32, %c0_i32_0 : i32, i32
  }
  func.func @transform_4(%arg0: i32, %arg1: memref<1xi32, #tpu.memory_space<smem>>) -> (i32, i32) {
    %c0_i32 = arith.constant 0 : i32
    %c0_i32_0 = arith.constant 0 : i32
    %c0_i32_1 = arith.constant 0 : i32
    return %c0_i32, %c0_i32_0 : i32, i32
  }
  func.func @transform_5(%arg0: i32, %arg1: memref<1xi32, #tpu.memory_space<smem>>) -> (i32, i32) {
    %c0_i32 = arith.constant 0 : i32
    %c0_i32_0 = arith.constant 0 : i32
    %c0_i32_1 = arith.constant 0 : i32
    return %c0_i32, %c0_i32_0 : i32, i32
  }
  func.func @transform_6(%arg0: i32, %arg1: memref<1xi32, #tpu.memory_space<smem>>) -> (i32, i32) {
    %c0_i32 = arith.constant 0 : i32
    %c0_i32_0 = arith.constant 0 : i32
    %c0_i32_1 = arith.constant 0 : i32
    return %c0_i32, %c0_i32_0 : i32, i32
  }
}

</mosaic_0001>

<llo_original>
// kernel: tpu_custom_call.1
$region0: #{tpu_custom_call.1}
  #allocation0 [shape = 'u32[]', space=smem, size = 0x4, offset = 0x4, fixed_abs, tag = 'smem constant byte address 0x4 - core index']
  #allocation1 [shape = 'u32[144,128]{1,0:T(1,128)}', space=vmem, size = 0x12000, scoped, tag = 'internal scratch']
  #allocation2 [shape = 'f32[1,32]{1,0:T(1,128)}', space=vmem, size = 0x200, scoped, tag = 'scratch operand']
  #allocation3 [shape = 'f32[1,96]{1,0:T(1,128)}', space=vmem, size = 0x200, scoped, tag = 'scratch operand']
  #allocation4 [shape = 's32[1]{0}', space=sflag, size = 0x4, scoped, tag = 'scoped memory for tpu_custom_call.1']
  #allocation5 [shape = 's32[1]{0:T(128)S(6)}', space=smem, size = 0x200, scoped, tag = 'prefetched SMEM operand 0']
  %s0 = inlined_call_operand.<no memory space> [shape: s32[1], index: 0, kind: input, shape index: {}]
  %s1 = inlined_call_operand.hbm [shape: f32[16,32], index: 1, kind: input, shape index: {}]
  %s2 = inlined_call_operand.vmem [shape: f32[1,32], index: 2, kind: input, shape index: {}]
  %s3 = inlined_call_operand.hbm [shape: f32[32,96], index: 3, kind: input, shape index: {}]
  %s4 = inlined_call_operand.vmem [shape: f32[1,96], index: 4, kind: input, shape index: {}]
  %s5 = inlined_call_operand.hbm [shape: f32[32,96], index: 5, kind: input, shape index: {}]
  %s6 = inlined_call_operand.vmem [shape: f32[1,96], index: 6, kind: input, shape index: {}]
  %s7 = inlined_call_operand.hbm [shape: f32[1,32], index: 7, kind: output, shape index: {}]
  %s8 = sld [smem:[#allocation0]]
  $region46: #{tpu_custom_call.1} parent=0
    _
  %s10 = ssub.s32 1, %s8
  %s11 = scalar_select 0, %s10, %s8
  %12 = sst [smem:[#allocation5]] %s0
  $region1: #{tpu_custom_call.1} parent=0
    #allocation6 [shape = 'u8[8192]{0}', space=vmem, size = 0x2000, scoped, tag = 'input window, operand 1, single buffered']
    #allocation7 [shape = 's32[1]{0}', space=sflag, size = 0x4, scoped, tag = 'scoped memory for tpu_custom_call.1']
    #allocation8 [shape = 's32[1]{0}', space=sflag, size = 0x4, scoped, tag = 'scoped memory for tpu_custom_call.1']
    #allocation9 [shape = 'u8[16384]{0}', space=vmem, size = 0x4000, scoped, tag = 'input window, operand 3, single buffered']
    #allocation10 [shape = 's32[1]{0}', space=sflag, size = 0x4, scoped, tag = 'scoped memory for tpu_custom_call.1']
    #allocation11 [shape = 'u8[16384]{0}', space=vmem, size = 0x4000, scoped, tag = 'input window, operand 5, single buffered']
    #allocation12 [shape = 'u8[512]{0}', space=vmem, size = 0x400, scoped, tag = 'output window, operand 0, single buffered']
    %13 = vsyncpa [#allocation7], 0
    %14 = vsyncpa [#allocation10], 0
    %15 = vsyncpa [#allocation8], 0
    // Predicated region
    $region2: #{tpu_custom_call.1} parent=1 // pred_check
      _
    $region3: #{tpu_custom_call.1} parent=1 // pred_check_branch
      %17 = sbr.rel (0) target = $region5
    $region4: #{tpu_custom_call.1} parent=1 // pred_region
      %s19 = ssub.s32 256, 256
      %20 = vsyncadd [#allocation7], %s19
      %s21 = sshll.u32 [#allocation6], 4
      %s22 = int_to_ptr.vmem [resolvable:$true] %s21
      %27 = dma.hbm_to_vmem [thread:$0]  %s1, 256, %s22, [#allocation7], 128, 128, 8
    $region5: #{tpu_custom_call.1} parent=1 // pred_fallthru
      _
    // Predicated region
    $region6: #{tpu_custom_call.1} parent=1 // pred_check
      _
    $region7: #{tpu_custom_call.1} parent=1 // pred_check_branch
      %29 = sbr.rel (0) target = $region9
    $region8: #{tpu_custom_call.1} parent=1 // pred_region
      _
    $region9: #{tpu_custom_call.1} parent=1 // pred_fallthru
      _
    // Predicated region
    $region10: #{tpu_custom_call.1} parent=1 // pred_check
      _
    $region11: #{tpu_custom_call.1} parent=1 // pred_check_branch
      %31 = sbr.rel (0) target = $region13
    $region12: #{tpu_custom_call.1} parent=1 // pred_region
      %s33 = ssub.s32 512, 512
      %34 = vsyncadd [#allocation10], %s33
      %s35 = sshll.u32 [#allocation9], 4
      %s36 = int_to_ptr.vmem [resolvable:$true] %s35
      %41 = dma.hbm_to_vmem [thread:$0]  %s3, 512, %s36, [#allocation10], 128, 128, 8
    $region13: #{tpu_custom_call.1} parent=1 // pred_fallthru
      _
    // Predicated region
    $region14: #{tpu_custom_call.1} parent=1 // pred_check
      _
    $region15: #{tpu_custom_call.1} parent=1 // pred_check_branch
      %43 = sbr.rel (0) target = $region17
    $region16: #{tpu_custom_call.1} parent=1 // pred_region
      _
    $region17: #{tpu_custom_call.1} parent=1 // pred_fallthru
      _
    // Predicated region
    $region18: #{tpu_custom_call.1} parent=1 // pred_check
      _
    $region19: #{tpu_custom_call.1} parent=1 // pred_check_branch
      %45 = sbr.rel (0) target = $region21
    $region20: #{tpu_custom_call.1} parent=1 // pred_region
      %s47 = ssub.s32 512, 512
      %48 = vsyncadd [#allocation10], %s47
      %s49 = sshll.u32 [#allocation11], 4
      %s50 = int_to_ptr.vmem [resolvable:$true] %s49
      %55 = dma.hbm_to_vmem [thread:$0]  %s5, 512, %s50, [#allocation10], 128, 128, 8
    $region21: #{tpu_custom_call.1} parent=1 // pred_fallthru
      _
    // Predicated region
    $region22: #{tpu_custom_call.1} parent=1 // pred_check
      _
    $region23: #{tpu_custom_call.1} parent=1 // pred_check_branch
      %57 = sbr.rel (0) target = $region25
    $region24: #{tpu_custom_call.1} parent=1 // pred_region
      _
    $region25: #{tpu_custom_call.1} parent=1 // pred_fallthru
      _
    // Predicated region
    $region26: #{tpu_custom_call.1} parent=1 // pred_check
      _
    $region27: #{tpu_custom_call.1} parent=1 // pred_check_branch
      %59 = sbr.rel (0) target = $region29
    $region28: #{tpu_custom_call.1} parent=1 // pred_region
      %60 = dma.done [#allocation7], 256
    $region29: #{tpu_custom_call.1} parent=1 // pred_fallthru
      _
    // Predicated region
    $region30: #{tpu_custom_call.1} parent=1 // pred_check
      _
    $region31: #{tpu_custom_call.1} parent=1 // pred_check_branch
      %62 = sbr.rel (0) target = $region33
    $region32: #{tpu_custom_call.1} parent=1 // pred_region
      %63 = dma.done [#allocation10], 512
    $region33: #{tpu_custom_call.1} parent=1 // pred_fallthru
      _
    // Predicated region
    $region34: #{tpu_custom_call.1} parent=1 // pred_check
      _
    $region35: #{tpu_custom_call.1} parent=1 // pred_check_branch
      %65 = sbr.rel (0) target = $region37
    $region36: #{tpu_custom_call.1} parent=1 // pred_region
      %66 = dma.done [#allocation10], 512
    $region37: #{tpu_custom_call.1} parent=1 // pred_fallthru
      _
    %s67 = sld [smem:[#allocation5]]
    %s68 = scalar_lea.vmem [#allocation6], %s67
    %v69 = vld [vmem:[%s68] sm:$0x1]
    %vm70 = vcmask 253952
    %71 = vst.msk [vmem:[#allocation2] sm:$0x1] %vm70, %v69
    %v72 = vld [vmem:[#allocation2] sm:$0x1]
    %v73 = vld [vmem:[#allocation9] sm:$0xff]
    %v74 = vld [vmem:[#allocation9 + $0x8] sm:$0xff]
    %v75 = vld [vmem:[#allocation9 + $0x10] sm:$0xff]
    %v76 = vld [vmem:[#allocation9 + $0x18] sm:$0xff]
    %v77 = vld [vmem:[%s4] sm:$0x1]
    %vm78 = vcmask 261120
    %v80 = vsel %vm78, %v72, 0
    %82 = vmatprep.subr.mxu0 0.0
    %83 = vmatpush1.msra.mxu0 %v73
    %84 = vmatprep.subr.mxu0 0.0
    %85 = vmatpush1.msra.mxu0 %v74
    %86 = vmatprep.subr.mxu0 0.0
    %87 = vmatpush1.msra.mxu0 %v75
    %88 = vmatprep.subr.mxu0 0.0
    %89 = vmatpush1.msra.mxu0 %v76
    %90 = vmatprep.subr.mxu0 0.0
    %91 = vmatpush1.msra.mxu0 0.0
    %92 = vmatprep.subr.mxu0 0.0
    %93 = vmatpush1.msra.mxu0 0.0
    %94 = vmatprep.subr.mxu0 0.0
    %95 = vmatpush1.msra.mxu0 0.0
    %96 = vmatprep.subr.mxu0 0.0
    %97 = vmatpush1.msra.mxu0 0.0
    %98 = vmatprep.subr.mxu0 0.0
    %99 = vmatpush1.msra.mxu0 0.0
    %100 = vmatprep.subr.mxu0 0.0
    %101 = vmatpush1.msra.mxu0 0.0
    %102 = vmatprep.subr.mxu0 0.0
    %103 = vmatpush1.msra.mxu0 0.0
    %104 = vmatprep.subr.mxu0 0.0
    %105 = vmatpush1.msra.mxu0 0.0
    %106 = vmatprep.subr.mxu0 0.0
    %107 = vmatpush1.msra.mxu0 0.0
    %108 = vmatprep.subr.mxu0 0.0
    %109 = vmatpush1.msra.mxu0 0.0
    %110 = vmatprep.subr.mxu0 0.0
    %111 = vmatpush1.msra.mxu0 0.0
    %112 = vmatprep.subr.mxu0 0.0
    %113 = vmatpush1.msra.mxu0 0.0
    %114 = vmatprep.subr.mxu0 0.0
    %115 = vmatpush1.msra.mxu0 0.0
    %116 = vmatprep.subr.mxu0 0.0
    %117 = vmatpush1.msra.mxu0 0.0
    %118 = vmatprep.subr.mxu0 0.0
    %119 = vmatpush1.msra.mxu0 0.0
    %120 = vmatprep.subr.mxu0 0.0
    %121 = vmatpush1.msra.mxu0 0.0
    %122 = vmatprep.subr.mxu0 0.0
    %123 = vmatpush1.msra.mxu0 0.0
    %124 = vmatprep.subr.mxu0 0.0
    %125 = vmatpush1.msra.mxu0 0.0
    %126 = vmatprep.subr.mxu0 0.0
    %127 = vmatpush1.msra.mxu0 0.0
    %128 = vmatprep.subr.mxu0 0.0
    %129 = vmatpush1.msra.mxu0 0.0
    %130 = vmatprep.subr.mxu0 0.0
    %131 = vmatpush1.msra.mxu0 0.0
    %132 = vmatprep.subr.mxu0 0.0
    %133 = vmatpush1.msra.mxu0 0.0
    %134 = vmatprep.subr.mxu0 0.0
    %135 = vmatpush1.msra.mxu0 0.0
    %136 = vmatprep.subr.mxu0 0.0
    %137 = vmatpush1.msra.mxu0 0.0
    %138 = vmatprep.subr.mxu0 0.0
    %139 = vmatpush1.msra.mxu0 0.0
    %140 = vmatprep.subr.mxu0 0.0
    %141 = vmatpush1.msra.mxu0 0.0
    %142 = vmatprep.subr.mxu0 0.0
    %143 = vmatpush1.msra.mxu0 0.0
    %144 = vmatprep.subr.mxu0 0.0
    %145 = vmatpush1.msra.mxu0 0.0
    %146 = vmatprep.mubr.f32.mxu0 0.0
    %147 = vmatmul.mubr.f32.gmra.mrb[0].mxu0 %v80
    %v148 = vpop.f32.mrb[0].mxu0
    %v149 = vadd.f32 %v77, %v148
    %v150 = vpop.f32.mrb[0].mxu0
    %151 = vdwg.mxu0
    %vm152 = vcmask 778240
    %153 = vst.msk [vmem:[#allocation3] sm:$0x1] %vm152, %v149
    %v154 = vld [vmem:[#allocation11] sm:$0xff]
    %v155 = vld [vmem:[#allocation11 + $0x8] sm:$0xff]
    %v156 = vld [vmem:[#allocation11 + $0x10] sm:$0xff]
    %v157 = vld [vmem:[#allocation11 + $0x18] sm:$0xff]
    %v158 = vld [vmem:[%s6] sm:$0x1]
    %v159 = vld [vmem:[%s2] sm:$0x1]
    %v160 = vld [vmem:[#allocation3] sm:$0x1]
    %v162 = vsel %vm78, %v159, 0
    %164 = vmatprep.subr.mxu0 0.0
    %165 = vmatpush1.msra.mxu0 %v154
    %166 = vmatprep.subr.mxu0 0.0
    %167 = vmatpush1.msra.mxu0 %v155
    %168 = vmatprep.subr.mxu0 0.0
    %169 = vmatpush1.msra.mxu0 %v156
    %170 = vmatprep.subr.mxu0 0.0
    %171 = vmatpush1.msra.mxu0 %v157
    %172 = vmatprep.subr.mxu0 0.0
    %173 = vmatpush1.msra.mxu0 0.0
    %174 = vmatprep.subr.mxu0 0.0
    %175 = vmatpush1.msra.mxu0 0.0
    %176 = vmatprep.subr.mxu0 0.0
    %177 = vmatpush1.msra.mxu0 0.0
    %178 = vmatprep.subr.mxu0 0.0
    %179 = vmatpush1.msra.mxu0 0.0
    %180 = vmatprep.subr.mxu0 0.0
    %181 = vmatpush1.msra.mxu0 0.0
    %182 = vmatprep.subr.mxu0 0.0
    %183 = vmatpush1.msra.mxu0 0.0
    %184 = vmatprep.subr.mxu0 0.0
    %185 = vmatpush1.msra.mxu0 0.0
    %186 = vmatprep.subr.mxu0 0.0
    %187 = vmatpush1.msra.mxu0 0.0
    %188 = vmatprep.subr.mxu0 0.0
    %189 = vmatpush1.msra.mxu0 0.0
    %190 = vmatprep.subr.mxu0 0.0
    %191 = vmatpush1.msra.mxu0 0.0
    %192 = vmatprep.subr.mxu0 0.0
    %193 = vmatpush1.msra.mxu0 0.0
    %194 = vmatprep.subr.mxu0 0.0
    %195 = vmatpush1.msra.mxu0 0.0
    %196 = vmatprep.subr.mxu0 0.0
    %197 = vmatpush1.msra.mxu0 0.0
    %198 = vmatprep.subr.mxu0 0.0
    %199 = vmatpush1.msra.mxu0 0.0
    %200 = vmatprep.subr.mxu0 0.0
    %201 = vmatpush1.msra.mxu0 0.0
    %202 = vmatprep.subr.mxu0 0.0
    %203 = vmatpush1.msra.mxu0 0.0
    %204 = vmatprep.subr.mxu0 0.0
    %205 = vmatpush1.msra.mxu0 0.0
    %206 = vmatprep.subr.mxu0 0.0
    %207 = vmatpush1.msra.mxu0 0.0
    %208 = vmatprep.subr.mxu0 0.0
    %209 = vmatpush1.msra.mxu0 0.0
    %210 = vmatprep.subr.mxu0 0.0
    %211 = vmatpush1.msra.mxu0 0.0
    %212 = vmatprep.subr.mxu0 0.0
    %213 = vmatpush1.msra.mxu0 0.0
    %214 = vmatprep.subr.mxu0 0.0
    %215 = vmatpush1.msra.mxu0 0.0
    %216 = vmatprep.subr.mxu0 0.0
    %217 = vmatpush1.msra.mxu0 0.0
    %218 = vmatprep.subr.mxu0 0.0
    %219 = vmatpush1.msra.mxu0 0.0
    %220 = vmatprep.subr.mxu0 0.0
    %221 = vmatpush1.msra.mxu0 0.0
    %222 = vmatprep.subr.mxu0 0.0
    %223 = vmatpush1.msra.mxu0 0.0
    %224 = vmatprep.subr.mxu0 0.0
    %225 = vmatpush1.msra.mxu0 0.0
    %226 = vmatprep.subr.mxu0 0.0
    %227 = vmatpush1.msra.mxu0 0.0
    %228 = vmatprep.mubr.f32.mxu0 0.0
    %229 = vmatmul.mubr.f32.gmra.mrb[0].mxu0 %v162
    %v230 = vpop.f32.mrb[0].mxu0
    %v231 = vadd.f32 %v158, %v230
    %v232 = vpop.f32.mrb[0].mxu0
    %233 = vdwg.mxu0
    %v234 = vadd.f32 %v160, %v231
    %v235 = vxor.u32 %v234, 2147483648
    %v236 = vmul.f32 %v235, 1.442695
    %v237 = vpow.pop %v236
    %v238 = vadd.f32 %v237, 1.0
    %v239 = vrcp.pop %v238
    %v240 = vmul.f32 1.0, %v239
    %v243 = vunpack.c.l.s4 1966171168
    %v244 = vunpack.c.0.s8 %v243
    %v245 = vlaneseq
    %v246 = vshrl.u32 %v245, 7
    %v247 = vsub.s32 %v244, %v246
    %v248 = vrot.slane %v231, %v247
    %v250 = vunpack.c.l.s4 1966171168
    %v251 = vunpack.c.0.s8 %v250
    %v252 = vlaneseq
    %v253 = vshrl.u32 %v252, 7
    %v254 = vsub.s32 %v251, %v253
    %v255 = vrot.slane %v248, %v254
    %256 = vrot.lane.b32.xlu0 %v255, 64
    %v257 = vpop.permute.xlu0 %256
    %v259 = vmul.f32 %v240, %v257
    %261 = vrot.lane.b32.xlu0 %v259, 64
    %v262 = vpop.permute.xlu0 %261
    %v264 = vadd.f32 %v160, %v262
    %v265 = vtanh.pop %v264
    %v266 = vsub.f32 1.0, %v240
    %268 = vrot.lane.b32.xlu0 %v265, 96
    %v269 = vpop.permute.xlu0 %268
    %v271 = vmul.f32 %v266, %v269
    %272 = vrot.lane.b32.xlu0 %v159, 32
    %v273 = vpop.permute.xlu0 %272
    %v275 = vmul.f32 %v240, %v273
    %v276 = vadd.f32 %v271, %v275
    %v278 = vlaneseq
    %v279 = vshrl.u32 %v278, 7
    %v280 = vsub.s32 0, %v279
    %v281 = vrot.slane %v276, %v280
    %282 = vrot.lane.b32.xlu0 %v281, 96
    %v283 = vpop.permute.xlu0 %282
    %285 = vst.msk [vmem:[#allocation12] sm:$0x1] %vm70, %v283
    // Predicated region
    $region38: #{tpu_custom_call.1} parent=1 // pred_check
      _
    $region39: #{tpu_custom_call.1} parent=1 // pred_check_branch
      %287 = sbr.rel (0) target = $region41
    $region40: #{tpu_custom_call.1} parent=1 // pred_region
      %s289 = ssub.s32 16, 16
      %290 = vsyncadd [#allocation8], %s289
      %s292 = sshll.u32 [#allocation12], 4
      %s293 = int_to_ptr.vmem [resolvable:$true] %s292
      %295 = dma.vmem_to_hbm [thread:$0]  %s293, 16, %s7, [#allocation8]
    $region41: #{tpu_custom_call.1} parent=1 // pred_fallthru
      _
    // Predicated region
    $region42: #{tpu_custom_call.1} parent=1 // pred_check
      _
    $region43: #{tpu_custom_call.1} parent=1 // pred_check_branch
      %297 = sbr.rel (0) target = $region45
    $region44: #{tpu_custom_call.1} parent=1 // pred_region
      %298 = dma.done [#allocation8], 16
    $region45: #{tpu_custom_call.1} parent=1 // pred_fallthru
      _
    %299 = vsyncpa [#allocation7], 1
    %300 = vsyncpa [#allocation10], 1
    %301 = vsyncpa [#allocation8], 1

</llo_original>
